<compile_context>
chip_gen: v7x
topology: tpu7x:2x2x1
jax: 0.10.0
libtpu: 0.0.40
codegen_flags: <defaults>
</compile_context>

<pallas_src>
import math

import jax
import jax.numpy as jnp
from jax.experimental import pallas as pl
from jax.experimental.pallas import tpu as pltpu

_LANES = 128
_TARGET_TILE_BYTES = 2 * 1024 * 1024      # per-half useful bytes per grid step (aligned path)
_UNALIGNED_TILE_BYTES = 512 * 1024        # smaller: (pre, 2, n) layout pads sublanes in VMEM
_VMEM_LIMIT_BYTES = 32 * 1024 * 1024      # >= scoped default on v6e/v7x, raises v5e's 16 MiB


def _round_up(a, b):
    return ((a + b - 1) // b) * b


def _round_down(a, b):
    return max(b, (a // b) * b)


def _sublane_quantum(itemsize):
    # f32 -> 8, bf16/f16 -> 16, int8/fp8 -> 32 (packed sublanes)
    return {4: 8, 2: 16, 1: 32}.get(itemsize, 8)


def _glu_kernel_split(a_ref, g_ref, o_ref):
    # a_ref, g_ref, o_ref: (tb, tr, 128) VMEM tiles. f32 math, one cast at the store.
    a = a_ref[...].astype(jnp.float32)
    g = g_ref[...].astype(jnp.float32)
    o_ref[...] = (a * jax.nn.sigmoid(g)).astype(o_ref.dtype)


def _glu_kernel_fused(x_ref, o_ref):
    # x_ref: (tb, 2, tn) with both halves; o_ref: (tb, 1, tn). Static sublane slices.
    a = x_ref[:, 0:1, :].astype(jnp.float32)
    g = x_ref[:, 1:2, :].astype(jnp.float32)
    o_ref[...] = (a * jax.nn.sigmoid(g)).astype(o_ref.dtype)


def _glu_aligned(x3, pre, n, dtype, itemsize):
    """Fast path: per-half tail length n is a multiple of 128 lanes."""
    rows = n // _LANES
    q = _sublane_quantum(itemsize)
    target_rows = max(q, _TARGET_TILE_BYTES // (_LANES * itemsize))  # 4096 f32 / 8192 bf16

    if rows >= target_rows:
        tr, tb = target_rows, 1                       # multiple of q by construction
    else:
        tr = rows                                     # full rows axis: always legal
        tb = min(pre, max(1, target_rows // rows))    # amortize small tails across pre
    grid_b = pl.cdiv(pre, tb)
    grid_r = pl.cdiv(rows, tr)

    # v7x has 2 TensorCores: avoid a degenerate (1,1) grid for medium/large inputs.
    if grid_b * grid_r == 1 and pre * rows * _LANES * itemsize >= (1 << 20):
        if rows >= 2 * q:
            tr = _round_up((rows + 1) // 2, q)
            grid_r = pl.cdiv(rows, tr)
        elif pre >= 2:
            tb = (pre + 1) // 2
            grid_b = pl.cdiv(pre, tb)

    x4 = x3.reshape(pre, 2, rows, _LANES)             # contiguous view; no data movement
    elems = pre * n
    out = pl.pallas_call(
        _glu_kernel_split,
        out_shape=jax.ShapeDtypeStruct((pre, rows, _LANES), dtype),
        grid=(grid_b, grid_r),
        in_specs=[
            # outputs half
            pl.BlockSpec((tb, None, tr, _LANES), lambda b, r: (b, 0, r, 0)),
            # gate half
            pl.BlockSpec((tb, None, tr, _LANES), lambda b, r: (b, 1, r, 0)),
        ],
        out_specs=pl.BlockSpec((tb, tr, _LANES), lambda b, r: (b, r, 0)),
        compiler_params=pltpu.CompilerParams(
            dimension_semantics=("parallel", "parallel"),
            vmem_limit_bytes=_VMEM_LIMIT_BYTES,
        ),
        cost_estimate=pl.CostEstimate(
            flops=2 * elems,
            transcendentals=elems,
            bytes_accessed=3 * elems * itemsize,
        ),
    )(x4, x4)
    return out.reshape(pre, n)


def _glu_unaligned(x3, pre, n, dtype, itemsize):
    """Pad-free path for n % 128 != 0: block last two dims are (2, tn) over the
    (pre, 2, n) view, tn a multiple of 128 (or n itself), boundary lanes masked."""
    budget = max(_LANES, _UNALIGNED_TILE_BYTES // itemsize)   # per-half elems per step
    if n <= budget:
        tn = n                                # equals full dim -> legal even unaligned
    else:
        tn = _round_down(budget, _LANES)      # 128-multiple, final block lane-masked
    grid_n = pl.cdiv(n, tn)
    tb = min(pre, max(1, budget // tn))
    grid_b = pl.cdiv(pre, tb)

    elems = pre * n
    out = pl.pallas_call(
        _glu_kernel_fused,
        out_shape=jax.ShapeDtypeStruct((pre, 1, n), dtype),
        grid=(grid_b, grid_n),
        in_specs=[pl.BlockSpec((tb, 2, tn), lambda b, c: (b, 0, c))],
        out_specs=pl.BlockSpec((tb, 1, tn), lambda b, c: (b, 0, c)),
        compiler_params=pltpu.CompilerParams(
            dimension_semantics=("parallel", "parallel"),
            vmem_limit_bytes=_VMEM_LIMIT_BYTES,
        ),
        cost_estimate=pl.CostEstimate(
            flops=2 * elems,
            transcendentals=elems,
            bytes_accessed=3 * elems * itemsize,
        ),
    )(x3)
    return out.reshape(pre, n)


def glu_pallas(x, dim=1):
    """outputs, gate = chunk(x, 2, dim); return outputs * sigmoid(gate)."""
    ndim = x.ndim
    dim = dim % ndim
    shape = x.shape
    assert shape[dim] % 2 == 0, "GLU split axis must have even size"

    pre = math.prod(shape[:dim])            # product of dims before the split axis
    half = shape[dim] // 2
    post = math.prod(shape[dim + 1:])       # product of dims after the split axis
    n = half * post                         # elements per half per leading row
    itemsize = jnp.dtype(x.dtype).itemsize

    # Each half is contiguous in this view: x3[:, 0, :] = outputs, x3[:, 1, :] = gate.
    x3 = x.reshape(pre, 2, n)

    if n % _LANES == 0:
        out2 = _glu_aligned(x3, pre, n, x.dtype, itemsize)
    else:
        out2 = _glu_unaligned(x3, pre, n, x.dtype, itemsize)

    return out2.reshape(shape[:dim] + (half,) + shape[dim + 1:])


def glu_reference(x, dim=1):
    a, g = jnp.split(x, 2, axis=dim)
    return (a.astype(jnp.float32) * jax.nn.sigmoid(g.astype(jnp.float32))).astype(x.dtype)


if __name__ == "__main__":
    key = jax.random.PRNGKey(0)
    k1, k2, k3, k4 = jax.random.split(key, 4)

    # Primary test: NCHW, split along channels (dim=1), 2C = 8 channels.
    x = jax.random.normal(k1, (2, 8, 16, 16), dtype=jnp.float32)
    y = jax.block_until_ready(glu_pallas(x, dim=1))
    y_ref = glu_reference(x, dim=1)
    assert y.shape == (2, 4, 16, 16)
    assert jnp.allclose(y, y_ref, atol=1e-5, rtol=1e-5)

    # bf16 path: f32 compute, single bf16 cast at the store.
    x_bf = jax.random.normal(k2, (2, 8, 16, 16), dtype=jnp.bfloat16)
    y_bf = jax.block_until_ready(glu_pallas(x_bf, dim=1))
    y_bf_ref = glu_reference(x_bf, dim=1)
    assert y_bf.shape == (2, 4, 16, 16)
    assert jnp.allclose(y_bf.astype(jnp.float32), y_bf_ref.astype(jnp.float32),
                        atol=2e-2, rtol=2e-2)

    # Unaligned tail (n = 3*10*12 = 360): pad-free masked-lane path.
    x_u = jax.random.normal(k3, (2, 6, 10, 12), dtype=jnp.float32)
    y_u = jax.block_until_ready(glu_pallas(x_u, dim=1))
    y_u_ref = glu_reference(x_u, dim=1)
    assert y_u.shape == (2, 3, 10, 12)
    assert jnp.allclose(y_u, y_u_ref, atol=1e-5, rtol=1e-5)

    # Medium aligned input: exercises the multi-step grid / two-TensorCore split.
    x_m = jax.random.normal(k4, (1, 8, 256, 256), dtype=jnp.float32)
    y_m = jax.block_until_ready(glu_pallas(x_m, dim=1))
    y_m_ref = glu_reference(x_m, dim=1)
    assert y_m.shape == (1, 4, 256, 256)
    assert jnp.allclose(y_m, y_m_ref, atol=1e-5, rtol=1e-5)

    print("KERNEL_OK")
</pallas_src>

<mosaic_0001>
module attributes {stable_mosaic.version = 11 : i64} {
  func.func @_glu_kernel_split(%arg0: i32, %arg1: i32, %arg2: memref<2x1x8x128xf32, #tpu.memory_space<vmem>>, %arg3: memref<2x1x8x128xf32, #tpu.memory_space<vmem>>, %arg4: memref<2x8x128xf32, #tpu.memory_space<vmem>>) attributes {dimension_semantics = [#tpu.dimension_semantics<parallel>, #tpu.dimension_semantics<parallel>], iteration_bounds = array<i64: 1, 1>, scalar_prefetch = 0 : i64, scratch_operands = 0 : i64, tpu.core_type = #tpu.core_type<tc>, window_params = [{transform_indices = @transform_0, window_bounds = array<i64: 2, 1, 8, 128>}, {transform_indices = @transform_1, window_bounds = array<i64: 2, 1, 8, 128>}, {transform_indices = @transform_2, window_bounds = array<i64: 2, 8, 128>}]} {
    %c0 = arith.constant 0 : index
    %c0_0 = arith.constant 0 : index
    %c0_1 = arith.constant 0 : index
    %c0_2 = arith.constant 0 : index
    %0 = vector.load %arg2[%c0, %c0_0, %c0_1, %c0_2] : memref<2x1x8x128xf32, #tpu.memory_space<vmem>>, vector<2x1x8x128xf32>
    %1 = vector.shape_cast %0 : vector<2x1x8x128xf32> to vector<2x8x128xf32>
    %c0_3 = arith.constant 0 : index
    %c0_4 = arith.constant 0 : index
    %c0_5 = arith.constant 0 : index
    %c0_6 = arith.constant 0 : index
    %2 = vector.load %arg3[%c0_3, %c0_4, %c0_5, %c0_6] : memref<2x1x8x128xf32, #tpu.memory_space<vmem>>, vector<2x1x8x128xf32>
    %3 = vector.shape_cast %2 : vector<2x1x8x128xf32> to vector<2x8x128xf32>
    %4 = arith.negf %3 : vector<2x8x128xf32>
    %5 = math.exp %4 : vector<2x8x128xf32>
    %cst = arith.constant 1.000000e+00 : f32
    %6 = vector.broadcast %cst : f32 to vector<2x8x128xf32>
    %7 = arith.addf %6, %5 : vector<2x8x128xf32>
    %8 = arith.divf %6, %7 : vector<2x8x128xf32>
    %9 = arith.mulf %1, %8 : vector<2x8x128xf32>
    %c0_7 = arith.constant 0 : index
    %c0_8 = arith.constant 0 : index
    %c0_9 = arith.constant 0 : index
    %10 = vector.load %arg4[%c0_7, %c0_8, %c0_9] : memref<2x8x128xf32, #tpu.memory_space<vmem>>, vector<2x8x128xf32>
    tpu.vector_store %arg4[%c0_7, %c0_8, %c0_9], %9 {strides = array<i32>} : memref<2x8x128xf32, #tpu.memory_space<vmem>>, vector<2x8x128xf32>,
    return
  }
  func.func @transform_0(%arg0: i32, %arg1: i32) -> (i32, i32, i32, i32) {
    %c0_i32 = arith.constant 0 : i32
    %c0_i32_0 = arith.constant 0 : i32
    %c0_i32_1 = arith.constant 0 : i32
    return %arg0, %c0_i32, %arg1, %c0_i32_0 : i32, i32, i32, i32
  }
  func.func @transform_1(%arg0: i32, %arg1: i32) -> (i32, i32, i32, i32) {
    %c1_i32 = arith.constant 1 : i32
    %c0_i32 = arith.constant 0 : i32
    %c0_i32_0 = arith.constant 0 : i32
    return %arg0, %c1_i32, %arg1, %c0_i32 : i32, i32, i32, i32
  }
  func.func @transform_2(%arg0: i32, %arg1: i32) -> (i32, i32, i32) {
    %c0_i32 = arith.constant 0 : i32
    %c0_i32_0 = arith.constant 0 : i32
    return %arg0, %arg1, %c0_i32 : i32, i32, i32
  }
}

</mosaic_0001>

<llo_original>
// kernel: tpu_custom_call.1
$region0: #{tpu_custom_call.1}
  #allocation0 [shape = 'u32[]', space=smem, size = 0x4, offset = 0x4, fixed_abs, tag = 'smem constant byte address 0x4 - core index']
  #allocation1 [shape = 'u32[144,128]{1,0:T(1,128)}', space=vmem, size = 0x12000, scoped, tag = 'internal scratch']
  %s0 = inlined_call_operand.hbm [shape: f32[2,2,8,128], index: 0, kind: input, shape index: {}]
  %s1 = inlined_call_operand.hbm [shape: f32[2,2,8,128], index: 1, kind: input, shape index: {}]
  %s2 = inlined_call_operand.hbm [shape: f32[2,8,128], index: 2, kind: output, shape index: {}]
  %s3 = sld [smem:[#allocation0]]
  $region26: #{tpu_custom_call.1} parent=0
    _
  %s5 = ssub.s32 1, %s3
  %s6 = scalar_select 0, %s5, %s3
  $region1: #{tpu_custom_call.1} parent=0
    #allocation2 [shape = 'u8[8192]{0}', space=vmem, size = 0x2000, scoped, tag = 'input window, operand 0, single buffered']
    #allocation3 [shape = 's32[1]{0}', space=sflag, size = 0x4, scoped, tag = 'scoped memory for tpu_custom_call.1']
    #allocation4 [shape = 's32[1]{0}', space=sflag, size = 0x4, scoped, tag = 'scoped memory for tpu_custom_call.1']
    #allocation5 [shape = 'u8[8192]{0}', space=vmem, size = 0x2000, scoped, tag = 'input window, operand 1, single buffered']
    #allocation6 [shape = 's32[1]{0}', space=sflag, size = 0x4, scoped, tag = 'scoped memory for tpu_custom_call.1']
    #allocation7 [shape = 'u8[8192]{0}', space=vmem, size = 0x2000, scoped, tag = 'output window, operand 0, single buffered']
    %7 = vsyncpa [#allocation3], 0
    %8 = vsyncpa [#allocation6], 0
    %9 = vsyncpa [#allocation4], 0
    // Predicated region
    $region2: #{tpu_custom_call.1} parent=1 // pred_check
      _
    $region3: #{tpu_custom_call.1} parent=1 // pred_check_branch
      %11 = sbr.rel (0) target = $region5
    $region4: #{tpu_custom_call.1} parent=1 // pred_region
      %s13 = ssub.s32 256, 256
      %14 = vsyncadd [#allocation3], %s13
      %s15 = sshll.u32 [#allocation2], 4
      %s16 = int_to_ptr.vmem [resolvable:$true] %s15
      %21 = dma.hbm_to_vmem [thread:$0]  %s0, 256, %s16, [#allocation3], 256, 128, 8
    $region5: #{tpu_custom_call.1} parent=1 // pred_fallthru
      _
    // Predicated region
    $region6: #{tpu_custom_call.1} parent=1 // pred_check
      _
    $region7: #{tpu_custom_call.1} parent=1 // pred_check_branch
      %23 = sbr.rel (0) target = $region9
    $region8: #{tpu_custom_call.1} parent=1 // pred_region
      %s25 = ssub.s32 256, 256
      %26 = vsyncadd [#allocation6], %s25
      %s27 = scalar_lea.hbm %s1, 128
      %s28 = sshll.u32 [#allocation5], 4
      %s29 = int_to_ptr.vmem [resolvable:$true] %s28
      %34 = dma.hbm_to_vmem [thread:$0]  %s27, 256, %s29, [#allocation6], 256, 128, 8
    $region9: #{tpu_custom_call.1} parent=1 // pred_fallthru
      _
    // Predicated region
    $region10: #{tpu_custom_call.1} parent=1 // pred_check
      _
    $region11: #{tpu_custom_call.1} parent=1 // pred_check_branch
      %36 = sbr.rel (0) target = $region13
    $region12: #{tpu_custom_call.1} parent=1 // pred_region
      %37 = dma.done [#allocation3], 256
    $region13: #{tpu_custom_call.1} parent=1 // pred_fallthru
      _
    // Predicated region
    $region14: #{tpu_custom_call.1} parent=1 // pred_check
      _
    $region15: #{tpu_custom_call.1} parent=1 // pred_check_branch
      %39 = sbr.rel (0) target = $region17
    $region16: #{tpu_custom_call.1} parent=1 // pred_region
      %40 = dma.done [#allocation6], 256
    $region17: #{tpu_custom_call.1} parent=1 // pred_fallthru
      _
    %v41 = vld [vmem:[#allocation2] sm:$0xff]
    %v42 = vld [vmem:[#allocation2 + $0x8] sm:$0xff]
    %v43 = vld [vmem:[#allocation5] sm:$0xff]
    %v44 = vld [vmem:[#allocation5 + $0x8] sm:$0xff]
    %v45 = vxor.u32 %v43, 2147483648
    %v46 = vxor.u32 %v44, 2147483648
    %v47 = vmul.f32 %v45, 1.442695
    %v48 = vpow.pop %v47
    %v49 = vmul.f32 %v46, 1.442695
    %v50 = vpow.pop %v49
    %v51 = vadd.f32 %v48, 1.0
    %v52 = vadd.f32 %v50, 1.0
    %v53 = vrcp.pop %v51
    %v54 = vmul.f32 1.0, %v53
    %v55 = vrcp.pop %v52
    %v56 = vmul.f32 1.0, %v55
    %v57 = vmul.f32 %v41, %v54
    %v58 = vmul.f32 %v42, %v56
    %59 = vst [vmem:[#allocation7] sm:$0xff] %v57
    %60 = vst [vmem:[#allocation7 + $0x8] sm:$0xff] %v58
    // Predicated region
    $region18: #{tpu_custom_call.1} parent=1 // pred_check
      _
    $region19: #{tpu_custom_call.1} parent=1 // pred_check_branch
      %62 = sbr.rel (0) target = $region21
    $region20: #{tpu_custom_call.1} parent=1 // pred_region
      %s64 = ssub.s32 256, 256
      %65 = vsyncadd [#allocation4], %s64
      %s66 = sshll.u32 [#allocation7], 4
      %s67 = int_to_ptr.vmem [resolvable:$true] %s66
      %72 = dma.vmem_to_hbm [thread:$0]  %s67, 256, %s2, [#allocation4], 128, 128, 8
    $region21: #{tpu_custom_call.1} parent=1 // pred_fallthru
      _
    // Predicated region
    $region22: #{tpu_custom_call.1} parent=1 // pred_check
      _
    $region23: #{tpu_custom_call.1} parent=1 // pred_check_branch
      %74 = sbr.rel (0) target = $region25
    $region24: #{tpu_custom_call.1} parent=1 // pred_region
      %75 = dma.done [#allocation4], 256
    $region25: #{tpu_custom_call.1} parent=1 // pred_fallthru
      _
    %76 = vsyncpa [#allocation3], 1
    %77 = vsyncpa [#allocation6], 1
    %78 = vsyncpa [#allocation4], 1

</llo_original>
